<compile_context>
chip_gen: v6e
topology: v6e:2x2x1
jax: 0.10.0
libtpu: 0.0.40
codegen_flags: <defaults>
</compile_context>

<pallas_src>
import functools

import jax
import jax.numpy as jnp
from jax.experimental import pallas as pl
from jax.experimental.pallas import tpu as pltpu


def gru_kernel(T, BT, H, x_ref, wih_ref, whh_ref, params_ref, out_ref):
    """One batch tile per grid step; the whole sequence lives in VMEM.

    x_ref      : (1, T*BT, D_in) bf16  time-major within the tile (rows t*BT+b)
    wih_ref    : (D_in, 3H)      bf16  concatenated input->gate weights (r|z|n)
    whh_ref    : (H, 3H)         bf16  concatenated hidden->gate weights (r|z|n)
    params_ref : (8, 3H)         f32   packed small params:
                   row 0 : b_ir+b_hr | b_iz+b_hz | b_in   (folded biases)
                   row 1 : b_hn  (first H lanes; kept separate: gated by r)
                   row 2 : fc weight row (first H lanes)
                   row 3 : fc bias at lane 0
    out_ref    : (BT, 1)         f32
    """
    bfold = params_ref[0:1, :]                 # (1, 3H)
    b_hn = params_ref[1:2, :H]                 # (1, H)
    wfc_row = params_ref[2:3, :H]              # (1, H)
    bfc = params_ref[3:4, 0:1]                 # (1, 1)

    # ---- hoisted, non-recurrent input path: all time steps in ONE matmul ----
    x = x_ref[0]                                                  # (T*BT, D_in)
    gates_i = jnp.dot(x, wih_ref[...],
                      preferred_element_type=jnp.float32) + bfold  # (T*BT, 3H)

    whh = whh_ref[...]                                            # (H, 3H) bf16

    # ---- serial recurrence: one small matmul + gate math per step ----------
    # T is a small static Python int -> fully unrolled at trace time; h is
    # carried as a value (f32), cast to bf16 only at the MXU boundary.
    h = jnp.zeros((BT, H), jnp.float32)
    for t in range(T):
        i_t = gates_i[t * BT:(t + 1) * BT, :]                      # (BT, 3H)
        hh = jnp.dot(h.astype(whh.dtype), whh,
                     preferred_element_type=jnp.float32)           # (BT, 3H)
        # fused r/z sigmoid: one EUP push over 2H lanes instead of two
        rz = jax.nn.sigmoid(i_t[:, :2 * H] + hh[:, :2 * H])        # (BT, 2H)
        r = rz[:, :H]
        z = rz[:, H:]
        n = jnp.tanh(i_t[:, 2 * H:] + r * (hh[:, 2 * H:] + b_hn))  # (BT, H)
        h = n + z * (h - n)                                        # (BT, H)

    # ---- fused fc (num_classes == 1): VPU multiply + lane reduction ---------
    out = jnp.sum(h * wfc_row, axis=-1, keepdims=True) + bfc       # (BT, 1)
    out_ref[...] = out.astype(out_ref.dtype)


def gru_forward(x_cat_btd, wih, whh, bih, bhh, wfc, bfc, *, max_batch_tile=128):
    """x_cat_btd: (B, T, D_in) batch-first concat of features + embedding.
    wih: (3, D_in, H), whh: (3, H, H), bih/bhh: (3, 1, H), gate order (r, z, n).
    wfc: (H, C) with C == 1, bfc: (1, C).  Returns (B, C)."""
    B, T, D_in = x_cat_btd.shape
    H = whh.shape[-1]
    C = wfc.shape[-1]
    assert C == 1, "fc reduction path assumes num_classes == 1"

    rup = lambda a, m: (a + m - 1) // m * m
    BT = min(max_batch_tile, rup(B, 8))   # batch-tile rows (multiple of 8)
    Bp = rup(B, BT)                       # padded batch
    nt = Bp // BT                         # grid size over batch tiles

    # glue: time-major, pad batch with zero rows, split into batch tiles and
    # flatten each tile to (T*BT, D_in) so the kernel can run the input-side
    # gate matmul for all time steps in one dot.
    x_tbd = jnp.transpose(x_cat_btd, (1, 0, 2))                  # (T, B, D)
    x_tbd = jnp.pad(x_tbd, ((0, 0), (0, Bp - B), (0, 0)))        # (T, Bp, D)
    x_tiles = (x_tbd.reshape(T, nt, BT, D_in)
               .transpose(1, 0, 2, 3)
               .reshape(nt, T * BT, D_in)
               .astype(jnp.bfloat16))                            # (nt, T*BT, D)

    # glue: concatenate gate weights (r | z | n), cast matmul operands to bf16.
    wih_cat = jnp.concatenate([wih[0], wih[1], wih[2]], axis=1).astype(jnp.bfloat16)
    whh_cat = jnp.concatenate([whh[0], whh[1], whh[2]], axis=1).astype(jnp.bfloat16)

    # glue: pack all tiny parameters into a single (8, 3H) f32 input (1 DMA).
    b_fold = jnp.concatenate([bih[0] + bhh[0],                   # r
                              bih[1] + bhh[1],                   # z
                              bih[2]], axis=1)                   # n (input side)
    params = jnp.zeros((8, 3 * H), jnp.float32)
    params = params.at[0, :].set(b_fold[0])
    params = params.at[1, :H].set(bhh[2][0])                     # b_hn
    params = params.at[2, :H].set(wfc[:, 0])                     # fc weight row
    params = params.at[3, 0].set(bfc[0, 0])                      # fc bias

    kernel = functools.partial(gru_kernel, T, BT, H)
    out_p = pl.pallas_call(
        kernel,
        out_shape=jax.ShapeDtypeStruct((Bp, C), jnp.float32),
        grid=(nt,),                                   # batch tiles
        in_specs=[
            pl.BlockSpec((1, T * BT, D_in), lambda i: (i, 0, 0)),   # per-tile seq
            pl.BlockSpec((D_in, 3 * H), lambda i: (0, 0)),          # W_ih (r|z|n)
            pl.BlockSpec((H, 3 * H), lambda i: (0, 0)),             # W_hh (r|z|n)
            pl.BlockSpec((8, 3 * H), lambda i: (0, 0)),             # packed params
        ],
        out_specs=pl.BlockSpec((BT, C), lambda i: (i, 0)),
        compiler_params=pltpu.CompilerParams(
            dimension_semantics=("parallel",)),       # split tiles across TCs on v7x
    )(x_tiles, wih_cat, whh_cat, params)

    return out_p[:B]                                  # drop batch padding


def ref_forward(x_cat_btd, wih, whh, bih, bhh, wfc, bfc):
    """Pure-JAX f32 reference mirroring torch.nn.GRU equations (unfused params)."""
    x_tbd = jnp.transpose(x_cat_btd, (1, 0, 2))
    B = x_tbd.shape[1]
    H = whh.shape[-1]

    def step(h, x_t):
        i_r = x_t @ wih[0] + bih[0]
        i_z = x_t @ wih[1] + bih[1]
        i_n = x_t @ wih[2] + bih[2]
        h_r = h @ whh[0] + bhh[0]
        h_z = h @ whh[1] + bhh[1]
        h_n = h @ whh[2] + bhh[2]
        r = jax.nn.sigmoid(i_r + h_r)
        z = jax.nn.sigmoid(i_z + h_z)
        n = jnp.tanh(i_n + r * h_n)
        return (1.0 - z) * n + z * h, None

    h0 = jnp.zeros((B, H), jnp.float32)
    hT, _ = jax.lax.scan(step, h0, x_tbd)
    return hT @ wfc + bfc


if __name__ == "__main__":
    # Small shapes consistent with the module's forward.
    B, T = 2, 8
    num_features = 8
    embedding_size = 16
    hidden_size = 32
    num_classes = 1
    vocab = 1000            # stand-in for 447972
    padding_idx = 999       # stand-in for 431231 (row zeroed)
    D_in = num_features + embedding_size

    key = jax.random.PRNGKey(0)
    keys = jax.random.split(key, 9)

    # inputs
    x = jax.random.normal(keys[0], (B, T, num_features), jnp.float32)
    x_idx = jax.random.randint(keys[1], (B, T), 0, vocab)

    # deterministic parameters
    emb = jax.random.normal(keys[2], (vocab, embedding_size), jnp.float32)
    emb = emb.at[padding_idx].set(0.0)

    k = 1.0 / jnp.sqrt(jnp.float32(hidden_size))
    u = lambda kk, shape: jax.random.uniform(kk, shape, jnp.float32, -k, k)
    wih = u(keys[3], (3, D_in, hidden_size))     # (r, z, n), already transposed
    whh = u(keys[4], (3, hidden_size, hidden_size))
    bih = u(keys[5], (3, 1, hidden_size))
    bhh = u(keys[6], (3, 1, hidden_size))
    wfc = u(keys[7], (hidden_size, num_classes))
    bfc = u(keys[8], (1, num_classes))

    # glue: embedding lookup + concat (batch_first, like the PyTorch module)
    # TODO(synk): production 447972-row gather should be fused/overlapped with
    # the kernel's hoisted input matmul; left to XLA here.
    x_emb = jnp.take(emb, x_idx, axis=0)              # (B, T, E)
    x_cat = jnp.concatenate([x, x_emb], axis=2)       # (B, T, D_in)

    out = gru_forward(x_cat, wih, whh, bih, bhh, wfc, bfc)
    out = jax.block_until_ready(out)                  # (B, num_classes)

    ref = ref_forward(x_cat, wih, whh, bih, bhh, wfc, bfc)
    assert out.shape == (B, num_classes)
    # Tolerance accounts for bf16 MXU operands in the kernel vs. the f32
    # reference accumulated over the T-step recurrence.
    assert jnp.allclose(out, ref, atol=3e-2, rtol=3e-2), (out, ref)

    print("KERNEL_OK")
</pallas_src>

<mosaic_0001>
module attributes {stable_mosaic.version = 11 : i64} {
  func.func @gru_kernel(%arg0: i32, %arg1: memref<1x64x24xbf16, #tpu.memory_space<vmem>>, %arg2: memref<24x96xbf16, #tpu.memory_space<vmem>>, %arg3: memref<32x96xbf16, #tpu.memory_space<vmem>>, %arg4: memref<8x96xf32, #tpu.memory_space<vmem>>, %arg5: memref<8x1xf32, #tpu.memory_space<vmem>>) attributes {dimension_semantics = [#tpu.dimension_semantics<parallel>], iteration_bounds = array<i64: 1>, scalar_prefetch = 0 : i64, scratch_operands = 0 : i64, tpu.core_type = #tpu.core_type<tc>, window_params = [{transform_indices = @transform_0, window_bounds = array<i64: 1, 64, 24>}, {pipeline_mode = #tpu.pipeline_mode<synchronous>, transform_indices = @transform_1, window_bounds = array<i64: 24, 96>}, {pipeline_mode = #tpu.pipeline_mode<synchronous>, transform_indices = @transform_2, window_bounds = array<i64: 32, 96>}, {pipeline_mode = #tpu.pipeline_mode<synchronous>, transform_indices = @transform_3, window_bounds = array<i64: 8, 96>}, {transform_indices = @transform_4, window_bounds = array<i64: 8, 1>}]} {
    %c0 = arith.constant 0 : index
    %c0_0 = arith.constant 0 : index
    %0 = vector.load %arg4[%c0, %c0_0] : memref<8x96xf32, #tpu.memory_space<vmem>>, vector<1x96xf32>
    %c1 = arith.constant 1 : index
    %c0_1 = arith.constant 0 : index
    %1 = vector.load %arg4[%c1, %c0_1] : memref<8x96xf32, #tpu.memory_space<vmem>>, vector<1x32xf32>
    %c2 = arith.constant 2 : index
    %c0_2 = arith.constant 0 : index
    %2 = vector.load %arg4[%c2, %c0_2] : memref<8x96xf32, #tpu.memory_space<vmem>>, vector<1x32xf32>
    %c3 = arith.constant 3 : index
    %c0_3 = arith.constant 0 : index
    %3 = vector.load %arg4[%c3, %c0_3] : memref<8x96xf32, #tpu.memory_space<vmem>>, vector<1x1xf32>
    %c0_4 = arith.constant 0 : index
    %c0_5 = arith.constant 0 : index
    %c0_6 = arith.constant 0 : index
    %4 = vector.load %arg1[%c0_4, %c0_5, %c0_6] : memref<1x64x24xbf16, #tpu.memory_space<vmem>>, vector<1x64x24xbf16>
    %5 = vector.shape_cast %4 : vector<1x64x24xbf16> to vector<64x24xbf16>
    %c0_7 = arith.constant 0 : index
    %c0_8 = arith.constant 0 : index
    %6 = vector.load %arg2[%c0_7, %c0_8] : memref<24x96xbf16, #tpu.memory_space<vmem>>, vector<24x96xbf16>
    %cst = arith.constant dense<0.000000e+00> : vector<64x96xf32>
    %7 = tpu.matmul %5, %6, %cst {dimension_numbers = #tpu.dot_dimension_numbers<[1], [0], [0], [1], [0, 0, 1, 1], [], []>} : vector<64x24xbf16>, vector<24x96xbf16>, vector<64x96xf32> -> vector<64x96xf32>
    %8 = vector.broadcast %0 : vector<1x96xf32> to vector<64x96xf32>
    %9 = arith.addf %7, %8 : vector<64x96xf32>
    %c0_9 = arith.constant 0 : index
    %c0_10 = arith.constant 0 : index
    %10 = vector.load %arg3[%c0_9, %c0_10] : memref<32x96xbf16, #tpu.memory_space<vmem>>, vector<32x96xbf16>
    %cst_11 = arith.constant 0.000000e+00 : f32
    %11 = vector.broadcast %cst_11 : f32 to vector<8x32xf32>
    %12 = vector.extract_strided_slice %9 {offsets = [0, 0], sizes = [8, 96], strides = [1, 1]} : vector<64x96xf32> to vector<8x96xf32>
    %13 = arith.truncf %11 : vector<8x32xf32> to vector<8x32xbf16>
    %cst_12 = arith.constant dense<0.000000e+00> : vector<8x96xf32>
    %14 = tpu.matmul %13, %10, %cst_12 {dimension_numbers = #tpu.dot_dimension_numbers<[1], [0], [0], [1], [0, 0, 1, 1], [], []>} : vector<8x32xbf16>, vector<32x96xbf16>, vector<8x96xf32> -> vector<8x96xf32>
    %15 = vector.extract_strided_slice %12 {offsets = [0, 0], sizes = [8, 64], strides = [1, 1]} : vector<8x96xf32> to vector<8x64xf32>
    %16 = vector.extract_strided_slice %14 {offsets = [0, 0], sizes = [8, 64], strides = [1, 1]} : vector<8x96xf32> to vector<8x64xf32>
    %17 = arith.addf %15, %16 : vector<8x64xf32>
    %18 = arith.negf %17 : vector<8x64xf32>
    %19 = math.exp %18 : vector<8x64xf32>
    %cst_13 = arith.constant 1.000000e+00 : f32
    %20 = vector.broadcast %cst_13 : f32 to vector<8x64xf32>
    %21 = arith.addf %20, %19 : vector<8x64xf32>
    %22 = arith.divf %20, %21 : vector<8x64xf32>
    %23 = vector.extract_strided_slice %22 {offsets = [0, 0], sizes = [8, 32], strides = [1, 1]} : vector<8x64xf32> to vector<8x32xf32>
    %24 = vector.extract_strided_slice %22 {offsets = [0, 32], sizes = [8, 32], strides = [1, 1]} : vector<8x64xf32> to vector<8x32xf32>
    %25 = vector.extract_strided_slice %12 {offsets = [0, 64], sizes = [8, 32], strides = [1, 1]} : vector<8x96xf32> to vector<8x32xf32>
    %26 = vector.extract_strided_slice %14 {offsets = [0, 64], sizes = [8, 32], strides = [1, 1]} : vector<8x96xf32> to vector<8x32xf32>
    %27 = vector.broadcast %1 : vector<1x32xf32> to vector<8x32xf32>
    %28 = arith.addf %26, %27 : vector<8x32xf32>
    %29 = arith.mulf %23, %28 : vector<8x32xf32>
    %30 = arith.addf %25, %29 : vector<8x32xf32>
    %31 = math.tanh %30 : vector<8x32xf32>
    %32 = arith.subf %11, %31 : vector<8x32xf32>
    %33 = arith.mulf %24, %32 : vector<8x32xf32>
    %34 = arith.addf %31, %33 : vector<8x32xf32>
    %35 = vector.extract_strided_slice %9 {offsets = [8, 0], sizes = [8, 96], strides = [1, 1]} : vector<64x96xf32> to vector<8x96xf32>
    %36 = arith.truncf %34 : vector<8x32xf32> to vector<8x32xbf16>
    %cst_14 = arith.constant dense<0.000000e+00> : vector<8x96xf32>
    %37 = tpu.matmul %36, %10, %cst_14 {dimension_numbers = #tpu.dot_dimension_numbers<[1], [0], [0], [1], [0, 0, 1, 1], [], []>} : vector<8x32xbf16>, vector<32x96xbf16>, vector<8x96xf32> -> vector<8x96xf32>
    %38 = vector.extract_strided_slice %35 {offsets = [0, 0], sizes = [8, 64], strides = [1, 1]} : vector<8x96xf32> to vector<8x64xf32>
    %39 = vector.extract_strided_slice %37 {offsets = [0, 0], sizes = [8, 64], strides = [1, 1]} : vector<8x96xf32> to vector<8x64xf32>
    %40 = arith.addf %38, %39 : vector<8x64xf32>
    %41 = arith.negf %40 : vector<8x64xf32>
    %42 = math.exp %41 : vector<8x64xf32>
    %cst_15 = arith.constant 1.000000e+00 : f32
    %43 = vector.broadcast %cst_15 : f32 to vector<8x64xf32>
    %44 = arith.addf %43, %42 : vector<8x64xf32>
    %45 = arith.divf %43, %44 : vector<8x64xf32>
    %46 = vector.extract_strided_slice %45 {offsets = [0, 0], sizes = [8, 32], strides = [1, 1]} : vector<8x64xf32> to vector<8x32xf32>
    %47 = vector.extract_strided_slice %45 {offsets = [0, 32], sizes = [8, 32], strides = [1, 1]} : vector<8x64xf32> to vector<8x32xf32>
    %48 = vector.extract_strided_slice %35 {offsets = [0, 64], sizes = [8, 32], strides = [1, 1]} : vector<8x96xf32> to vector<8x32xf32>
    %49 = vector.extract_strided_slice %37 {offsets = [0, 64], sizes = [8, 32], strides = [1, 1]} : vector<8x96xf32> to vector<8x32xf32>
    %50 = vector.broadcast %1 : vector<1x32xf32> to vector<8x32xf32>
    %51 = arith.addf %49, %50 : vector<8x32xf32>
    %52 = arith.mulf %46, %51 : vector<8x32xf32>
    %53 = arith.addf %48, %52 : vector<8x32xf32>
    %54 = math.tanh %53 : vector<8x32xf32>
    %55 = arith.subf %34, %54 : vector<8x32xf32>
    %56 = arith.mulf %47, %55 : vector<8x32xf32>
    %57 = arith.addf %54, %56 : vector<8x32xf32>
    %58 = vector.extract_strided_slice %9 {offsets = [16, 0], sizes = [8, 96], strides = [1, 1]} : vector<64x96xf32> to vector<8x96xf32>
    %59 = arith.truncf %57 : vector<8x32xf32> to vector<8x32xbf16>
    %cst_16 = arith.constant dense<0.000000e+00> : vector<8x96xf32>
    %60 = tpu.matmul %59, %10, %cst_16 {dimension_numbers = #tpu.dot_dimension_numbers<[1], [0], [0], [1], [0, 0, 1, 1], [], []>} : vector<8x32xbf16>, vector<32x96xbf16>, vector<8x96xf32> -> vector<8x96xf32>
    %61 = vector.extract_strided_slice %58 {offsets = [0, 0], sizes = [8, 64], strides = [1, 1]} : vector<8x96xf32> to vector<8x64xf32>
    %62 = vector.extract_strided_slice %60 {offsets = [0, 0], sizes = [8, 64], strides = [1, 1]} : vector<8x96xf32> to vector<8x64xf32>
    %63 = arith.addf %61, %62 : vector<8x64xf32>
    %64 = arith.negf %63 : vector<8x64xf32>
    %65 = math.exp %64 : vector<8x64xf32>
    %cst_17 = arith.constant 1.000000e+00 : f32
    %66 = vector.broadcast %cst_17 : f32 to vector<8x64xf32>
    %67 = arith.addf %66, %65 : vector<8x64xf32>
    %68 = arith.divf %66, %67 : vector<8x64xf32>
    %69 = vector.extract_strided_slice %68 {offsets = [0, 0], sizes = [8, 32], strides = [1, 1]} : vector<8x64xf32> to vector<8x32xf32>
    %70 = vector.extract_strided_slice %68 {offsets = [0, 32], sizes = [8, 32], strides = [1, 1]} : vector<8x64xf32> to vector<8x32xf32>
    %71 = vector.extract_strided_slice %58 {offsets = [0, 64], sizes = [8, 32], strides = [1, 1]} : vector<8x96xf32> to vector<8x32xf32>
    %72 = vector.extract_strided_slice %60 {offsets = [0, 64], sizes = [8, 32], strides = [1, 1]} : vector<8x96xf32> to vector<8x32xf32>
    %73 = vector.broadcast %1 : vector<1x32xf32> to vector<8x32xf32>
    %74 = arith.addf %72, %73 : vector<8x32xf32>
    %75 = arith.mulf %69, %74 : vector<8x32xf32>
    %76 = arith.addf %71, %75 : vector<8x32xf32>
    %77 = math.tanh %76 : vector<8x32xf32>
    %78 = arith.subf %57, %77 : vector<8x32xf32>
    %79 = arith.mulf %70, %78 : vector<8x32xf32>
    %80 = arith.addf %77, %79 : vector<8x32xf32>
    %81 = vector.extract_strided_slice %9 {offsets = [24, 0], sizes = [8, 96], strides = [1, 1]} : vector<64x96xf32> to vector<8x96xf32>
    %82 = arith.truncf %80 : vector<8x32xf32> to vector<8x32xbf16>
    %cst_18 = arith.constant dense<0.000000e+00> : vector<8x96xf32>
    %83 = tpu.matmul %82, %10, %cst_18 {dimension_numbers = #tpu.dot_dimension_numbers<[1], [0], [0], [1], [0, 0, 1, 1], [], []>} : vector<8x32xbf16>, vector<32x96xbf16>, vector<8x96xf32> -> vector<8x96xf32>
    %84 = vector.extract_strided_slice %81 {offsets = [0, 0], sizes = [8, 64], strides = [1, 1]} : vector<8x96xf32> to vector<8x64xf32>
    %85 = vector.extract_strided_slice %83 {offsets = [0, 0], sizes = [8, 64], strides = [1, 1]} : vector<8x96xf32> to vector<8x64xf32>
    %86 = arith.addf %84, %85 : vector<8x64xf32>
    %87 = arith.negf %86 : vector<8x64xf32>
    %88 = math.exp %87 : vector<8x64xf32>
    %cst_19 = arith.constant 1.000000e+00 : f32
    %89 = vector.broadcast %cst_19 : f32 to vector<8x64xf32>
    %90 = arith.addf %89, %88 : vector<8x64xf32>
    %91 = arith.divf %89, %90 : vector<8x64xf32>
    %92 = vector.extract_strided_slice %91 {offsets = [0, 0], sizes = [8, 32], strides = [1, 1]} : vector<8x64xf32> to vector<8x32xf32>
    %93 = vector.extract_strided_slice %91 {offsets = [0, 32], sizes = [8, 32], strides = [1, 1]} : vector<8x64xf32> to vector<8x32xf32>
    %94 = vector.extract_strided_slice %81 {offsets = [0, 64], sizes = [8, 32], strides = [1, 1]} : vector<8x96xf32> to vector<8x32xf32>
    %95 = vector.extract_strided_slice %83 {offsets = [0, 64], sizes = [8, 32], strides = [1, 1]} : vector<8x96xf32> to vector<8x32xf32>
    %96 = vector.broadcast %1 : vector<1x32xf32> to vector<8x32xf32>
    %97 = arith.addf %95, %96 : vector<8x32xf32>
    %98 = arith.mulf %92, %97 : vector<8x32xf32>
    %99 = arith.addf %94, %98 : vector<8x32xf32>
    %100 = math.tanh %99 : vector<8x32xf32>
    %101 = arith.subf %80, %100 : vector<8x32xf32>
    %102 = arith.mulf %93, %101 : vector<8x32xf32>
    %103 = arith.addf %100, %102 : vector<8x32xf32>
    %104 = vector.extract_strided_slice %9 {offsets = [32, 0], sizes = [8, 96], strides = [1, 1]} : vector<64x96xf32> to vector<8x96xf32>
    %105 = arith.truncf %103 : vector<8x32xf32> to vector<8x32xbf16>
    %cst_20 = arith.constant dense<0.000000e+00> : vector<8x96xf32>
    %106 = tpu.matmul %105, %10, %cst_20 {dimension_numbers = #tpu.dot_dimension_numbers<[1], [0], [0], [1], [0, 0, 1, 1], [], []>} : vector<8x32xbf16>, vector<32x96xbf16>, vector<8x96xf32> -> vector<8x96xf32>
    %107 = vector.extract_strided_slice %104 {offsets = [0, 0], sizes = [8, 64], strides = [1, 1]} : vector<8x96xf32> to vector<8x64xf32>
    %108 = vector.extract_strided_slice %106 {offsets = [0, 0], sizes = [8, 64], strides = [1, 1]} : vector<8x96xf32> to vector<8x64xf32>
    %109 = arith.addf %107, %108 : vector<8x64xf32>
    %110 = arith.negf %109 : vector<8x64xf32>
    %111 = math.exp %110 : vector<8x64xf32>
    %cst_21 = arith.constant 1.000000e+00 : f32
    %112 = vector.broadcast %cst_21 : f32 to vector<8x64xf32>
    %113 = arith.addf %112, %111 : vector<8x64xf32>
    %114 = arith.divf %112, %113 : vector<8x64xf32>
    %115 = vector.extract_strided_slice %114 {offsets = [0, 0], sizes = [8, 32], strides = [1, 1]} : vector<8x64xf32> to vector<8x32xf32>
    %116 = vector.extract_strided_slice %114 {offsets = [0, 32], sizes = [8, 32], strides = [1, 1]} : vector<8x64xf32> to vector<8x32xf32>
    %117 = vector.extract_strided_slice %104 {offsets = [0, 64], sizes = [8, 32], strides = [1, 1]} : vector<8x96xf32> to vector<8x32xf32>
    %118 = vector.extract_strided_slice %106 {offsets = [0, 64], sizes = [8, 32], strides = [1, 1]} : vector<8x96xf32> to vector<8x32xf32>
    %119 = vector.broadcast %1 : vector<1x32xf32> to vector<8x32xf32>
    %120 = arith.addf %118, %119 : vector<8x32xf32>
    %121 = arith.mulf %115, %120 : vector<8x32xf32>
    %122 = arith.addf %117, %121 : vector<8x32xf32>
    %123 = math.tanh %122 : vector<8x32xf32>
    %124 = arith.subf %103, %123 : vector<8x32xf32>
    %125 = arith.mulf %116, %124 : vector<8x32xf32>
    %126 = arith.addf %123, %125 : vector<8x32xf32>
    %127 = vector.extract_strided_slice %9 {offsets = [40, 0], sizes = [8, 96], strides = [1, 1]} : vector<64x96xf32> to vector<8x96xf32>
    %128 = arith.truncf %126 : vector<8x32xf32> to vector<8x32xbf16>
    %cst_22 = arith.constant dense<0.000000e+00> : vector<8x96xf32>
    %129 = tpu.matmul %128, %10, %cst_22 {dimension_numbers = #tpu.dot_dimension_numbers<[1], [0], [0], [1], [0, 0, 1, 1], [], []>} : vector<8x32xbf16>, vector<32x96xbf16>, vector<8x96xf32> -> vector<8x96xf32>
    %130 = vector.extract_strided_slice %127 {offsets = [0, 0], sizes = [8, 64], strides = [1, 1]} : vector<8x96xf32> to vector<8x64xf32>
    %131 = vector.extract_strided_slice %129 {offsets = [0, 0], sizes = [8, 64], strides = [1, 1]} : vector<8x96xf32> to vector<8x64xf32>
    %132 = arith.addf %130, %131 : vector<8x64xf32>
    %133 = arith.negf %132 : vector<8x64xf32>
    %134 = math.exp %133 : vector<8x64xf32>
    %cst_23 = arith.constant 1.000000e+00 : f32
    %135 = vector.broadcast %cst_23 : f32 to vector<8x64xf32>
    %136 = arith.addf %135, %134 : vector<8x64xf32>
    %137 = arith.divf %135, %136 : vector<8x64xf32>
    %138 = vector.extract_strided_slice %137 {offsets = [0, 0], sizes = [8, 32], strides = [1, 1]} : vector<8x64xf32> to vector<8x32xf32>
    %139 = vector.extract_strided_slice %137 {offsets = [0, 32], sizes = [8, 32], strides = [1, 1]} : vector<8x64xf32> to vector<8x32xf32>
    %140 = vector.extract_strided_slice %127 {offsets = [0, 64], sizes = [8, 32], strides = [1, 1]} : vector<8x96xf32> to vector<8x32xf32>
    %141 = vector.extract_strided_slice %129 {offsets = [0, 64], sizes = [8, 32], strides = [1, 1]} : vector<8x96xf32> to vector<8x32xf32>
    %142 = vector.broadcast %1 : vector<1x32xf32> to vector<8x32xf32>
    %143 = arith.addf %141, %142 : vector<8x32xf32>
    %144 = arith.mulf %138, %143 : vector<8x32xf32>
    %145 = arith.addf %140, %144 : vector<8x32xf32>
    %146 = math.tanh %145 : vector<8x32xf32>
    %147 = arith.subf %126, %146 : vector<8x32xf32>
    %148 = arith.mulf %139, %147 : vector<8x32xf32>
    %149 = arith.addf %146, %148 : vector<8x32xf32>
    %150 = vector.extract_strided_slice %9 {offsets = [48, 0], sizes = [8, 96], strides = [1, 1]} : vector<64x96xf32> to vector<8x96xf32>
    %151 = arith.truncf %149 : vector<8x32xf32> to vector<8x32xbf16>
    %cst_24 = arith.constant dense<0.000000e+00> : vector<8x96xf32>
    %152 = tpu.matmul %151, %10, %cst_24 {dimension_numbers = #tpu.dot_dimension_numbers<[1], [0], [0], [1], [0, 0, 1, 1], [], []>} : vector<8x32xbf16>, vector<32x96xbf16>, vector<8x96xf32> -> vector<8x96xf32>
    %153 = vector.extract_strided_slice %150 {offsets = [0, 0], sizes = [8, 64], strides = [1, 1]} : vector<8x96xf32> to vector<8x64xf32>
    %154 = vector.extract_strided_slice %152 {offsets = [0, 0], sizes = [8, 64], strides = [1, 1]} : vector<8x96xf32> to vector<8x64xf32>
    %155 = arith.addf %153, %154 : vector<8x64xf32>
    %156 = arith.negf %155 : vector<8x64xf32>
    %157 = math.exp %156 : vector<8x64xf32>
    %cst_25 = arith.constant 1.000000e+00 : f32
    %158 = vector.broadcast %cst_25 : f32 to vector<8x64xf32>
    %159 = arith.addf %158, %157 : vector<8x64xf32>
    %160 = arith.divf %158, %159 : vector<8x64xf32>
    %161 = vector.extract_strided_slice %160 {offsets = [0, 0], sizes = [8, 32], strides = [1, 1]} : vector<8x64xf32> to vector<8x32xf32>
    %162 = vector.extract_strided_slice %160 {offsets = [0, 32], sizes = [8, 32], strides = [1, 1]} : vector<8x64xf32> to vector<8x32xf32>
    %163 = vector.extract_strided_slice %150 {offsets = [0, 64], sizes = [8, 32], strides = [1, 1]} : vector<8x96xf32> to vector<8x32xf32>
    %164 = vector.extract_strided_slice %152 {offsets = [0, 64], sizes = [8, 32], strides = [1, 1]} : vector<8x96xf32> to vector<8x32xf32>
    %165 = vector.broadcast %1 : vector<1x32xf32> to vector<8x32xf32>
    %166 = arith.addf %164, %165 : vector<8x32xf32>
    %167 = arith.mulf %161, %166 : vector<8x32xf32>
    %168 = arith.addf %163, %167 : vector<8x32xf32>
    %169 = math.tanh %168 : vector<8x32xf32>
    %170 = arith.subf %149, %169 : vector<8x32xf32>
    %171 = arith.mulf %162, %170 : vector<8x32xf32>
    %172 = arith.addf %169, %171 : vector<8x32xf32>
    %173 = vector.extract_strided_slice %9 {offsets = [56, 0], sizes = [8, 96], strides = [1, 1]} : vector<64x96xf32> to vector<8x96xf32>
    %174 = arith.truncf %172 : vector<8x32xf32> to vector<8x32xbf16>
    %cst_26 = arith.constant dense<0.000000e+00> : vector<8x96xf32>
    %175 = tpu.matmul %174, %10, %cst_26 {dimension_numbers = #tpu.dot_dimension_numbers<[1], [0], [0], [1], [0, 0, 1, 1], [], []>} : vector<8x32xbf16>, vector<32x96xbf16>, vector<8x96xf32> -> vector<8x96xf32>
    %176 = vector.extract_strided_slice %173 {offsets = [0, 0], sizes = [8, 64], strides = [1, 1]} : vector<8x96xf32> to vector<8x64xf32>
    %177 = vector.extract_strided_slice %175 {offsets = [0, 0], sizes = [8, 64], strides = [1, 1]} : vector<8x96xf32> to vector<8x64xf32>
    %178 = arith.addf %176, %177 : vector<8x64xf32>
    %179 = arith.negf %178 : vector<8x64xf32>
    %180 = math.exp %179 : vector<8x64xf32>
    %cst_27 = arith.constant 1.000000e+00 : f32
    %181 = vector.broadcast %cst_27 : f32 to vector<8x64xf32>
    %182 = arith.addf %181, %180 : vector<8x64xf32>
    %183 = arith.divf %181, %182 : vector<8x64xf32>
    %184 = vector.extract_strided_slice %183 {offsets = [0, 0], sizes = [8, 32], strides = [1, 1]} : vector<8x64xf32> to vector<8x32xf32>
    %185 = vector.extract_strided_slice %183 {offsets = [0, 32], sizes = [8, 32], strides = [1, 1]} : vector<8x64xf32> to vector<8x32xf32>
    %186 = vector.extract_strided_slice %173 {offsets = [0, 64], sizes = [8, 32], strides = [1, 1]} : vector<8x96xf32> to vector<8x32xf32>
    %187 = vector.extract_strided_slice %175 {offsets = [0, 64], sizes = [8, 32], strides = [1, 1]} : vector<8x96xf32> to vector<8x32xf32>
    %188 = vector.broadcast %1 : vector<1x32xf32> to vector<8x32xf32>
    %189 = arith.addf %187, %188 : vector<8x32xf32>
    %190 = arith.mulf %184, %189 : vector<8x32xf32>
    %191 = arith.addf %186, %190 : vector<8x32xf32>
    %192 = math.tanh %191 : vector<8x32xf32>
    %193 = arith.subf %172, %192 : vector<8x32xf32>
    %194 = arith.mulf %185, %193 : vector<8x32xf32>
    %195 = arith.addf %192, %194 : vector<8x32xf32>
    %196 = vector.broadcast %2 : vector<1x32xf32> to vector<8x32xf32>
    %197 = arith.mulf %195, %196 : vector<8x32xf32>
    %cst_28 = arith.constant dense<0.000000e+00> : vector<8xf32>
    %198 = vector.multi_reduction <add>, %197, %cst_28 [1] : vector<8x32xf32> to vector<8xf32>
    %199 = vector.shape_cast %198 : vector<8xf32> to vector<8x1xf32>
    %200 = vector.broadcast %3 : vector<1x1xf32> to vector<8x1xf32>
    %201 = arith.addf %199, %200 : vector<8x1xf32>
    %c0_29 = arith.constant 0 : index
    %c0_30 = arith.constant 0 : index
    %202 = vector.load %arg5[%c0_29, %c0_30] : memref<8x1xf32, #tpu.memory_space<vmem>>, vector<8x1xf32>
    tpu.vector_store %arg5[%c0_29, %c0_30], %201 {strides = array<i32>} : memref<8x1xf32, #tpu.memory_space<vmem>>, vector<8x1xf32>,
    return
  }
  func.func @transform_0(%arg0: i32) -> (i32, i32, i32) {
    %c0_i32 = arith.constant 0 : i32
    %c0_i32_0 = arith.constant 0 : i32
    %c0_i32_1 = arith.constant 0 : i32
    return %arg0, %c0_i32, %c0_i32_0 : i32, i32, i32
  }
  func.func @transform_1(%arg0: i32) -> (i32, i32) {
    %c0_i32 = arith.constant 0 : i32
    %c0_i32_0 = arith.constant 0 : i32
    %c0_i32_1 = arith.constant 0 : i32
    return %c0_i32, %c0_i32_0 : i32, i32
  }
  func.func @transform_2(%arg0: i32) -> (i32, i32) {
    %c0_i32 = arith.constant 0 : i32
    %c0_i32_0 = arith.constant 0 : i32
    %c0_i32_1 = arith.constant 0 : i32
    return %c0_i32, %c0_i32_0 : i32, i32
  }
  func.func @transform_3(%arg0: i32) -> (i32, i32) {
    %c0_i32 = arith.constant 0 : i32
    %c0_i32_0 = arith.constant 0 : i32
    %c0_i32_1 = arith.constant 0 : i32
    return %c0_i32, %c0_i32_0 : i32, i32
  }
  func.func @transform_4(%arg0: i32) -> (i32, i32) {
    %c0_i32 = arith.constant 0 : i32
    %c0_i32_0 = arith.constant 0 : i32
    return %arg0, %c0_i32 : i32, i32
  }
}

</mosaic_0001>

<llo_original>
// kernel: tpu_custom_call.1
$region0: #{tpu_custom_call.1}
  #allocation0 [shape = 'u32[]', space=smem, size = 0x4, offset = 0x4, fixed_abs, tag = 'smem constant byte address 0x4 - core index']
  #allocation1 [shape = 'u32[144,128]{1,0:T(1,128)}', space=vmem, size = 0x12000, scoped, tag = 'internal scratch']
  %s0 = inlined_call_operand.vmem [shape: bf16[1,64,24], index: 0, kind: input, shape index: {}]
  %s1 = inlined_call_operand.vmem [shape: bf16[24,96], index: 1, kind: input, shape index: {}]
  %s2 = inlined_call_operand.vmem [shape: bf16[32,96], index: 2, kind: input, shape index: {}]
  %s3 = inlined_call_operand.vmem [shape: f32[8,96], index: 3, kind: input, shape index: {}]
  %s4 = inlined_call_operand.vmem [shape: f32[8,1], index: 4, kind: output, shape index: {}]
  %s5 = sld [smem:[#allocation0]]
  $region26: #{tpu_custom_call.1} parent=0
    _
  %s7 = ssub.s32 1, %s5
  %s8 = scalar_select 0, %s7, %s5
  // Predicated region
  $region2: #{tpu_custom_call.1} parent=0 // pred_check
    _
  $region3: #{tpu_custom_call.1} parent=0 // pred_check_branch
    %10 = sbr.rel (0) target = $region5
  $region4: #{tpu_custom_call.1} parent=0 // pred_region
    _
  $region5: #{tpu_custom_call.1} parent=0 // pred_fallthru
    _
  // Predicated region
  $region6: #{tpu_custom_call.1} parent=0 // pred_check
    _
  $region7: #{tpu_custom_call.1} parent=0 // pred_check_branch
    %12 = sbr.rel (0) target = $region9
  $region8: #{tpu_custom_call.1} parent=0 // pred_region
    _
  $region9: #{tpu_custom_call.1} parent=0 // pred_fallthru
    _
  // Predicated region
  $region10: #{tpu_custom_call.1} parent=0 // pred_check
    _
  $region11: #{tpu_custom_call.1} parent=0 // pred_check_branch
    %14 = sbr.rel (0) target = $region13
  $region12: #{tpu_custom_call.1} parent=0 // pred_region
    _
  $region13: #{tpu_custom_call.1} parent=0 // pred_fallthru
    _
  // Predicated region
  $region14: #{tpu_custom_call.1} parent=0 // pred_check
    _
  $region15: #{tpu_custom_call.1} parent=0 // pred_check_branch
    %16 = sbr.rel (0) target = $region17
  $region16: #{tpu_custom_call.1} parent=0 // pred_region
    _
  $region17: #{tpu_custom_call.1} parent=0 // pred_fallthru
    _
  %v18 = vld [vmem:[%s3] sm:$0x1]
  %v19 = vld [vmem:[%s3 + $0x1] sm:$0x1]
  %v20 = vld [vmem:[%s3 + $0x2] sm:$0x1]
  %v21 = vld [vmem:[%s3 + $0x3] sm:$0x1]
  %v22 = vld [vmem:[%s0] sm:$0xf]
  %v23 = vld [vmem:[%s0 + $0x4] sm:$0xf]
  %v24 = vld [vmem:[%s0 + $0x8] sm:$0xf]
  %v25 = vld [vmem:[%s0 + $0xc] sm:$0xf]
  %v26 = vld [vmem:[%s0 + $0x10] sm:$0xf]
  %v27 = vld [vmem:[%s0 + $0x14] sm:$0xf]
  %v28 = vld [vmem:[%s0 + $0x18] sm:$0xf]
  %v29 = vld [vmem:[%s0 + $0x1c] sm:$0xf]
  %v30 = vld [vmem:[%s1] sm:$0xf]
  %v31 = vld [vmem:[%s1 + $0x4] sm:$0xf]
  %v32 = vld [vmem:[%s1 + $0x8] sm:$0xf]
  %v33 = vlaneseq
  %v34 = vshrl.u32 %v33, 7
  %v35 = vsub.s32 0, %v34
  %v36 = vrot.slane %v18, %v35
  %v45 = vunpack.c.l.b16 %v22
  %v46 = vunpack.c.l.b16 %v23
  %v47 = vunpack.c.l.b16 %v24
  %v48 = vunpack.c.l.b16 %v25
  %v49 = vunpack.c.l.b16 %v26
  %v50 = vunpack.c.l.b16 %v27
  %v51 = vunpack.c.l.b16 %v28
  %v52 = vunpack.c.l.b16 %v29
  %v53 = vpack.c.b16 %v46, %v45
  %v54 = vpack.c.b16 %v48, %v47
  %v55 = vpack.c.b16 %v50, %v49
  %v56 = vpack.c.b16 %v52, %v51
  %v60 = vunpack.c.l.b16 %v30
  %v61 = vunpack.c.l.b16 %v31
  %v62 = vunpack.c.l.b16 %v32
  %v63 = vpack.c.b16 %v61, %v60
  %v64 = vpack.c.b16 %v62, %v62
  %vm66 = vcmask 195584
  %v68 = vsel %vm66, %v53, 0
  %v71 = vsel %vm66, %v54, 0
  %v74 = vsel %vm66, %v55, 0
  %v77 = vsel %vm66, %v56, 0
  %vm79 = vcmask 1043456
  %v81 = vsel %vm79, %v64, 0
  %83 = vmatprep.subr.bf16.mxu0 0
  %84 = vmatpush1.bf16.msra.mxu0 0
  %85 = vmatprep.subr.bf16.mxu0 0
  %86 = vmatpush1.bf16.msra.mxu0 0
  %87 = vmatprep.subr.bf16.mxu0 0
  %88 = vmatpush1.bf16.msra.mxu0 0
  %89 = vmatprep.subr.bf16.mxu0 0
  %90 = vmatpush1.bf16.msra.mxu0 0
  %91 = vmatprep.subr.bf16.mxu0 0
  %92 = vmatpush1.bf16.msra.mxu0 0
  %93 = vmatprep.subr.bf16.mxu0 0
  %94 = vmatpush1.bf16.msra.mxu0 0
  %95 = vmatprep.subr.bf16.mxu0 0
  %96 = vmatpush1.bf16.msra.mxu0 %v81
  %97 = vmatprep.subr.bf16.mxu0 0
  %98 = vmatpush1.bf16.msra.mxu0 %v63
  %99 = vmatprep.subr.bf16.mxu0 0
  %100 = vmatpush2.bf16.msra.mxu0 0
  %101 = vmatprep.subr.bf16.mxu0 0
  %102 = vmatpush2.bf16.msra.mxu0 0
  %103 = vmatprep.subr.bf16.mxu0 0
  %104 = vmatpush2.bf16.msra.mxu0 0
  %105 = vmatprep.subr.bf16.mxu0 0
  %106 = vmatpush2.bf16.msra.mxu0 0
  %107 = vmatprep.subr.bf16.mxu0 0
  %108 = vmatpush2.bf16.msra.mxu0 0
  %109 = vmatprep.subr.bf16.mxu0 0
  %110 = vmatpush2.bf16.msra.mxu0 0
  %111 = vmatprep.subr.bf16.mxu0 0
  %112 = vmatpush2.bf16.msra.mxu0 0
  %113 = vmatprep.subr.bf16.mxu0 0
  %114 = vmatpush2.bf16.msra.mxu0 0
  %115 = vmatprep.mubr.bf16.mxu0 0
  %116 = vmatmul.mubr.bf16.gmra.mxu0 %v68
  %v117 = vpop.f32.mrf.mxu0
  %v118 = vadd.f32 %v36, %v117
  %v119 = vpop.f32.mrf.mxu0
  %v120 = vpop.f32.mrf.mxu0
  %v121 = vadd.f32 %v36, %v120
  %v122 = vpop.f32.mrf.mxu0
  %123 = vmatprep.mubr.bf16.mxu0 0
  %124 = vmatmul.mubr.bf16.gmra.mxu0 %v71
  %v125 = vpop.f32.mrf.mxu0
  %v126 = vadd.f32 %v36, %v125
  %v127 = vpop.f32.mrf.mxu0
  %v128 = vpop.f32.mrf.mxu0
  %v129 = vadd.f32 %v36, %v128
  %v130 = vpop.f32.mrf.mxu0
  %131 = vmatprep.mubr.bf16.mxu0 0
  %132 = vmatmul.mubr.bf16.gmra.mxu0 %v74
  %v133 = vpop.f32.mrf.mxu0
  %v134 = vadd.f32 %v36, %v133
  %v135 = vpop.f32.mrf.mxu0
  %v136 = vpop.f32.mrf.mxu0
  %v137 = vadd.f32 %v36, %v136
  %v138 = vpop.f32.mrf.mxu0
  %139 = vmatprep.mubr.bf16.mxu0 0
  %140 = vmatmul.mubr.bf16.gmra.mxu0 %v77
  %v141 = vpop.f32.mrf.mxu0
  %v142 = vadd.f32 %v36, %v141
  %v143 = vpop.f32.mrf.mxu0
  %v144 = vpop.f32.mrf.mxu0
  %v145 = vadd.f32 %v36, %v144
  %v146 = vpop.f32.mrf.mxu0
  %147 = vdwg.mxu0
  %v148 = vld [vmem:[%s2] sm:$0xf]
  %v149 = vld [vmem:[%s2 + $0x4] sm:$0xf]
  %v150 = vld [vmem:[%s2 + $0x8] sm:$0xf]
  %v151 = vld [vmem:[%s2 + $0xc] sm:$0xf]
  %v156 = vunpack.c.l.b16 %v148
  %v157 = vunpack.c.l.b16 %v149
  %v158 = vunpack.c.l.b16 %v150
  %v159 = vunpack.c.l.b16 %v151
  %v160 = vpack.c.b16 %v157, %v156
  %v161 = vpack.c.b16 %v159, %v158
  %vm164 = vcmask 261120
  %v166 = vsel %vm164, 0, 0
  %168 = vmatprep.subr.bf16.mxu0 0
  %169 = vmatpush1.bf16.msra.mxu0 0
  %170 = vmatprep.subr.bf16.mxu0 0
  %171 = vmatpush1.bf16.msra.mxu0 0
  %172 = vmatprep.subr.bf16.mxu0 0
  %173 = vmatpush1.bf16.msra.mxu0 0
  %174 = vmatprep.subr.bf16.mxu0 0
  %175 = vmatpush1.bf16.msra.mxu0 0
  %176 = vmatprep.subr.bf16.mxu0 0
  %177 = vmatpush1.bf16.msra.mxu0 0
  %178 = vmatprep.subr.bf16.mxu0 0
  %179 = vmatpush1.bf16.msra.mxu0 0
  %180 = vmatprep.subr.bf16.mxu0 0
  %181 = vmatpush1.bf16.msra.mxu0 %v161
  %182 = vmatprep.subr.bf16.mxu0 0
  %183 = vmatpush1.bf16.msra.mxu0 %v160
  %184 = vmatprep.subr.bf16.mxu0 0
  %185 = vmatpush2.bf16.msra.mxu0 0
  %186 = vmatprep.subr.bf16.mxu0 0
  %187 = vmatpush2.bf16.msra.mxu0 0
  %188 = vmatprep.subr.bf16.mxu0 0
  %189 = vmatpush2.bf16.msra.mxu0 0
  %190 = vmatprep.subr.bf16.mxu0 0
  %191 = vmatpush2.bf16.msra.mxu0 0
  %192 = vmatprep.subr.bf16.mxu0 0
  %193 = vmatpush2.bf16.msra.mxu0 0
  %194 = vmatprep.subr.bf16.mxu0 0
  %195 = vmatpush2.bf16.msra.mxu0 0
  %196 = vmatprep.subr.bf16.mxu0 0
  %197 = vmatpush2.bf16.msra.mxu0 0
  %198 = vmatprep.subr.bf16.mxu0 0
  %199 = vmatpush2.bf16.msra.mxu0 0
  %200 = vmatprep.mubr.bf16.mxu0 0
  %201 = vmatmul.mubr.bf16.gmra.mxu0 %v166
  %v202 = vpop.f32.mrf.mxu0
  %v203 = vadd.f32 0.0, %v202
  %v204 = vpop.f32.mrf.mxu0
  %v205 = vpop.f32.mrf.mxu0
  %v206 = vpop.f32.mrf.mxu0
  %207 = vdwg.mxu0
  %v208 = vadd.f32 %v118, %v203
  %v209 = vxor.u32 %v208, 2147483648
  %v210 = vmul.f32 %v209, 1.442695
  %v211 = vpow.pop %v210
  %v212 = vadd.f32 %v211, 1.0
  %v213 = vrcp.pop %v212
  %v214 = vmul.f32 1.0, %v213
  %v215 = vlaneseq
  %v216 = vshrl.u32 %v215, 7
  %v217 = vsub.s32 0, %v216
  %v218 = vrot.slane %v19, %v217
  %220 = vrot.lane.b32.xlu0 %v218, 64
  %v221 = vpop.permute.xlu0 %220
  %v223 = vadd.f32 %v203, %v221
  %225 = vrot.lane.b32.xlu0 %v223, 64
  %v226 = vpop.permute.xlu0 %225
  %v228 = vmul.f32 %v214, %v226
  %230 = vrot.lane.b32.xlu0 %v228, 64
  %v231 = vpop.permute.xlu0 %230
  %v233 = vadd.f32 %v118, %v231
  %v234 = vtanh.pop %v233
  %v235 = vsub.f32 0.0, %v234
  %237 = vrot.lane.b32.xlu0 %v235, 96
  %v238 = vpop.permute.xlu0 %237
  %v240 = vmul.f32 %v214, %v238
  %242 = vrot.lane.b32.xlu0 %v240, 32
  %v243 = vpop.permute.xlu0 %242
  %v245 = vadd.f32 %v234, %v243
  %v246 = vpack.c.bf16 %v245, %v245
  %248 = vrot.lane.b32.xlu0 %v246, 64
  %v249 = vpop.permute.xlu0 %248
  %v251 = vsel %vm164, %v249, 0
  %253 = vmatprep.subr.bf16.mxu0 0
  %254 = vmatpush1.bf16.msra.mxu0 0
  %255 = vmatprep.subr.bf16.mxu0 0
  %256 = vmatpush1.bf16.msra.mxu0 0
  %257 = vmatprep.subr.bf16.mxu0 0
  %258 = vmatpush1.bf16.msra.mxu0 0
  %259 = vmatprep.subr.bf16.mxu0 0
  %260 = vmatpush1.bf16.msra.mxu0 0
  %261 = vmatprep.subr.bf16.mxu0 0
  %262 = vmatpush1.bf16.msra.mxu0 0
  %263 = vmatprep.subr.bf16.mxu0 0
  %264 = vmatpush1.bf16.msra.mxu0 0
  %265 = vmatprep.subr.bf16.mxu0 0
  %266 = vmatpush1.bf16.msra.mxu0 %v161
  %267 = vmatprep.subr.bf16.mxu0 0
  %268 = vmatpush1.bf16.msra.mxu0 %v160
  %269 = vmatprep.subr.bf16.mxu0 0
  %270 = vmatpush2.bf16.msra.mxu0 0
  %271 = vmatprep.subr.bf16.mxu0 0
  %272 = vmatpush2.bf16.msra.mxu0 0
  %273 = vmatprep.subr.bf16.mxu0 0
  %274 = vmatpush2.bf16.msra.mxu0 0
  %275 = vmatprep.subr.bf16.mxu0 0
  %276 = vmatpush2.bf16.msra.mxu0 0
  %277 = vmatprep.subr.bf16.mxu0 0
  %278 = vmatpush2.bf16.msra.mxu0 0
  %279 = vmatprep.subr.bf16.mxu0 0
  %280 = vmatpush2.bf16.msra.mxu0 0
  %281 = vmatprep.subr.bf16.mxu0 0
  %282 = vmatpush2.bf16.msra.mxu0 0
  %283 = vmatprep.subr.bf16.mxu0 0
  %284 = vmatpush2.bf16.msra.mxu0 0
  %285 = vmatprep.mubr.bf16.mxu0 0
  %286 = vmatmul.mubr.bf16.gmra.mxu0 %v251
  %v287 = vpop.f32.mrf.mxu0
  %v288 = vadd.f32 0.0, %v287
  %v289 = vpop.f32.mrf.mxu0
  %v290 = vpop.f32.mrf.mxu0
  %v291 = vpop.f32.mrf.mxu0
  %292 = vdwg.mxu0
  %v293 = vadd.f32 %v121, %v288
  %v294 = vxor.u32 %v293, 2147483648
  %v295 = vmul.f32 %v294, 1.442695
  %v296 = vpow.pop %v295
  %v297 = vadd.f32 %v296, 1.0
  %v298 = vrcp.pop %v297
  %v299 = vmul.f32 1.0, %v298
  %v300 = vadd.f32 %v288, %v221
  %302 = vrot.lane.b32.xlu0 %v300, 64
  %v303 = vpop.permute.xlu0 %302
  %v305 = vmul.f32 %v299, %v303
  %307 = vrot.lane.b32.xlu0 %v305, 64
  %v308 = vpop.permute.xlu0 %307
  %v310 = vadd.f32 %v121, %v308
  %v311 = vtanh.pop %v310
  %v312 = vsub.f32 %v245, %v311
  %314 = vrot.lane.b32.xlu0 %v312, 96
  %v315 = vpop.permute.xlu0 %314
  %v317 = vmul.f32 %v299, %v315
  %319 = vrot.lane.b32.xlu0 %v317, 32
  %v320 = vpop.permute.xlu0 %319
  %v322 = vadd.f32 %v311, %v320
  %v323 = vpack.c.bf16 %v322, %v322
  %325 = vrot.lane.b32.xlu0 %v323, 64
  %v326 = vpop.permute.xlu0 %325
  %v328 = vsel %vm164, %v326, 0
  %330 = vmatprep.subr.bf16.mxu0 0
  %331 = vmatpush1.bf16.msra.mxu0 0
  %332 = vmatprep.subr.bf16.mxu0 0
  %333 = vmatpush1.bf16.msra.mxu0 0
  %334 = vmatprep.subr.bf16.mxu0 0
  %335 = vmatpush1.bf16.msra.mxu0 0
  %336 = vmatprep.subr.bf16.mxu0 0
  %337 = vmatpush1.bf16.msra.mxu0 0
  %338 = vmatprep.subr.bf16.mxu0 0
  %339 = vmatpush1.bf16.msra.mxu0 0
  %340 = vmatprep.subr.bf16.mxu0 0
  %341 = vmatpush1.bf16.msra.mxu0 0
  %342 = vmatprep.subr.bf16.mxu0 0
  %343 = vmatpush1.bf16.msra.mxu0 %v161
  %344 = vmatprep.subr.bf16.mxu0 0
  %345 = vmatpush1.bf16.msra.mxu0 %v160
  %346 = vmatprep.subr.bf16.mxu0 0
  %347 = vmatpush2.bf16.msra.mxu0 0
  %348 = vmatprep.subr.bf16.mxu0 0
  %349 = vmatpush2.bf16.msra.mxu0 0
  %350 = vmatprep.subr.bf16.mxu0 0
  %351 = vmatpush2.bf16.msra.mxu0 0
  %352 = vmatprep.subr.bf16.mxu0 0
  %353 = vmatpush2.bf16.msra.mxu0 0
  %354 = vmatprep.subr.bf16.mxu0 0
  %355 = vmatpush2.bf16.msra.mxu0 0
  %356 = vmatprep.subr.bf16.mxu0 0
  %357 = vmatpush2.bf16.msra.mxu0 0
  %358 = vmatprep.subr.bf16.mxu0 0
  %359 = vmatpush2.bf16.msra.mxu0 0
  %360 = vmatprep.subr.bf16.mxu0 0
  %361 = vmatpush2.bf16.msra.mxu0 0
  %362 = vmatprep.mubr.bf16.mxu0 0
  %363 = vmatmul.mubr.bf16.gmra.mxu0 %v328
  %v364 = vpop.f32.mrf.mxu0
  %v365 = vadd.f32 0.0, %v364
  %v366 = vpop.f32.mrf.mxu0
  %v367 = vpop.f32.mrf.mxu0
  %v368 = vpop.f32.mrf.mxu0
  %369 = vdwg.mxu0
  %v370 = vadd.f32 %v126, %v365
  %v371 = vxor.u32 %v370, 2147483648
  %v372 = vmul.f32 %v371, 1.442695
  %v373 = vpow.pop %v372
  %v374 = vadd.f32 %v373, 1.0
  %v375 = vrcp.pop %v374
  %v376 = vmul.f32 1.0, %v375
  %v377 = vadd.f32 %v365, %v221
  %379 = vrot.lane.b32.xlu0 %v377, 64
  %v380 = vpop.permute.xlu0 %379
  %v382 = vmul.f32 %v376, %v380
  %384 = vrot.lane.b32.xlu0 %v382, 64
  %v385 = vpop.permute.xlu0 %384
  %v387 = vadd.f32 %v126, %v385
  %v388 = vtanh.pop %v387
  %v389 = vsub.f32 %v322, %v388
  %391 = vrot.lane.b32.xlu0 %v389, 96
  %v392 = vpop.permute.xlu0 %391
  %v394 = vmul.f32 %v376, %v392
  %396 = vrot.lane.b32.xlu0 %v394, 32
  %v397 = vpop.permute.xlu0 %396
  %v399 = vadd.f32 %v388, %v397
  %v400 = vpack.c.bf16 %v399, %v399
  %402 = vrot.lane.b32.xlu0 %v400, 64
  %v403 = vpop.permute.xlu0 %402
  %v405 = vsel %vm164, %v403, 0
  %407 = vmatprep.subr.bf16.mxu0 0
  %408 = vmatpush1.bf16.msra.mxu0 0
  %409 = vmatprep.subr.bf16.mxu0 0
  %410 = vmatpush1.bf16.msra.mxu0 0
  %411 = vmatprep.subr.bf16.mxu0 0
  %412 = vmatpush1.bf16.msra.mxu0 0
  %413 = vmatprep.subr.bf16.mxu0 0
  %414 = vmatpush1.bf16.msra.mxu0 0
  %415 = vmatprep.subr.bf16.mxu0 0
  %416 = vmatpush1.bf16.msra.mxu0 0
  %417 = vmatprep.subr.bf16.mxu0 0
  %418 = vmatpush1.bf16.msra.mxu0 0
  %419 = vmatprep.subr.bf16.mxu0 0
  %420 = vmatpush1.bf16.msra.mxu0 %v161
  %421 = vmatprep.subr.bf16.mxu0 0
  %422 = vmatpush1.bf16.msra.mxu0 %v160
  %423 = vmatprep.subr.bf16.mxu0 0
  %424 = vmatpush2.bf16.msra.mxu0 0
  %425 = vmatprep.subr.bf16.mxu0 0
  %426 = vmatpush2.bf16.msra.mxu0 0
  %427 = vmatprep.subr.bf16.mxu0 0
  %428 = vmatpush2.bf16.msra.mxu0 0
  %429 = vmatprep.subr.bf16.mxu0 0
  %430 = vmatpush2.bf16.msra.mxu0 0
  %431 = vmatprep.subr.bf16.mxu0 0
  %432 = vmatpush2.bf16.msra.mxu0 0
  %433 = vmatprep.subr.bf16.mxu0 0
  %434 = vmatpush2.bf16.msra.mxu0 0
  %435 = vmatprep.subr.bf16.mxu0 0
  %436 = vmatpush2.bf16.msra.mxu0 0
  %437 = vmatprep.subr.bf16.mxu0 0
  %438 = vmatpush2.bf16.msra.mxu0 0
  %439 = vmatprep.mubr.bf16.mxu0 0
  %440 = vmatmul.mubr.bf16.gmra.mxu0 %v405
  %v441 = vpop.f32.mrf.mxu0
  %v442 = vadd.f32 0.0, %v441
  %v443 = vpop.f32.mrf.mxu0
  %v444 = vpop.f32.mrf.mxu0
  %v445 = vpop.f32.mrf.mxu0
  %446 = vdwg.mxu0
  %v447 = vadd.f32 %v129, %v442
  %v448 = vxor.u32 %v447, 2147483648
  %v449 = vmul.f32 %v448, 1.442695
  %v450 = vpow.pop %v449
  %v451 = vadd.f32 %v450, 1.0
  %v452 = vrcp.pop %v451
  %v453 = vmul.f32 1.0, %v452
  %v454 = vadd.f32 %v442, %v221
  %456 = vrot.lane.b32.xlu0 %v454, 64
  %v457 = vpop.permute.xlu0 %456
  %v459 = vmul.f32 %v453, %v457
  %461 = vrot.lane.b32.xlu0 %v459, 64
  %v462 = vpop.permute.xlu0 %461
  %v464 = vadd.f32 %v129, %v462
  %v465 = vtanh.pop %v464
  %v466 = vsub.f32 %v399, %v465
  %468 = vrot.lane.b32.xlu0 %v466, 96
  %v469 = vpop.permute.xlu0 %468
  %v471 = vmul.f32 %v453, %v469
  %473 = vrot.lane.b32.xlu0 %v471, 32
  %v474 = vpop.permute.xlu0 %473
  %v476 = vadd.f32 %v465, %v474
  %v477 = vpack.c.bf16 %v476, %v476
  %479 = vrot.lane.b32.xlu0 %v477, 64
  %v480 = vpop.permute.xlu0 %479
  %v482 = vsel %vm164, %v480, 0
  %484 = vmatprep.subr.bf16.mxu0 0
  %485 = vmatpush1.bf16.msra.mxu0 0
  %486 = vmatprep.subr.bf16.mxu0 0
  %487 = vmatpush1.bf16.msra.mxu0 0
  %488 = vmatprep.subr.bf16.mxu0 0
  %489 = vmatpush1.bf16.msra.mxu0 0
  %490 = vmatprep.subr.bf16.mxu0 0
  %491 = vmatpush1.bf16.msra.mxu0 0
  %492 = vmatprep.subr.bf16.mxu0 0
  %493 = vmatpush1.bf16.msra.mxu0 0
  %494 = vmatprep.subr.bf16.mxu0 0
  %495 = vmatpush1.bf16.msra.mxu0 0
  %496 = vmatprep.subr.bf16.mxu0 0
  %497 = vmatpush1.bf16.msra.mxu0 %v161
  %498 = vmatprep.subr.bf16.mxu0 0
  %499 = vmatpush1.bf16.msra.mxu0 %v160
  %500 = vmatprep.subr.bf16.mxu0 0
  %501 = vmatpush2.bf16.msra.mxu0 0
  %502 = vmatprep.subr.bf16.mxu0 0
  %503 = vmatpush2.bf16.msra.mxu0 0
  %504 = vmatprep.subr.bf16.mxu0 0
  %505 = vmatpush2.bf16.msra.mxu0 0
  %506 = vmatprep.subr.bf16.mxu0 0
  %507 = vmatpush2.bf16.msra.mxu0 0
  %508 = vmatprep.subr.bf16.mxu0 0
  %509 = vmatpush2.bf16.msra.mxu0 0
  %510 = vmatprep.subr.bf16.mxu0 0
  %511 = vmatpush2.bf16.msra.mxu0 0
  %512 = vmatprep.subr.bf16.mxu0 0
  %513 = vmatpush2.bf16.msra.mxu0 0
  %514 = vmatprep.subr.bf16.mxu0 0
  %515 = vmatpush2.bf16.msra.mxu0 0
  %516 = vmatprep.mubr.bf16.mxu0 0
  %517 = vmatmul.mubr.bf16.gmra.mxu0 %v482
  %v518 = vpop.f32.mrf.mxu0
  %v519 = vadd.f32 0.0, %v518
  %v520 = vpop.f32.mrf.mxu0
  %v521 = vpop.f32.mrf.mxu0
  %v522 = vpop.f32.mrf.mxu0
  %523 = vdwg.mxu0
  %v524 = vadd.f32 %v134, %v519
  %v525 = vxor.u32 %v524, 2147483648
  %v526 = vmul.f32 %v525, 1.442695
  %v527 = vpow.pop %v526
  %v528 = vadd.f32 %v527, 1.0
  %v529 = vrcp.pop %v528
  %v530 = vmul.f32 1.0, %v529
  %v531 = vadd.f32 %v519, %v221
  %533 = vrot.lane.b32.xlu0 %v531, 64
  %v534 = vpop.permute.xlu0 %533
  %v536 = vmul.f32 %v530, %v534
  %538 = vrot.lane.b32.xlu0 %v536, 64
  %v539 = vpop.permute.xlu0 %538
  %v541 = vadd.f32 %v134, %v539
  %v542 = vtanh.pop %v541
  %v543 = vsub.f32 %v476, %v542
  %545 = vrot.lane.b32.xlu0 %v543, 96
  %v546 = vpop.permute.xlu0 %545
  %v548 = vmul.f32 %v530, %v546
  %550 = vrot.lane.b32.xlu0 %v548, 32
  %v551 = vpop.permute.xlu0 %550
  %v553 = vadd.f32 %v542, %v551
  %v554 = vpack.c.bf16 %v553, %v553
  %556 = vrot.lane.b32.xlu0 %v554, 64
  %v557 = vpop.permute.xlu0 %556
  %v559 = vsel %vm164, %v557, 0
  %561 = vmatprep.subr.bf16.mxu0 0
  %562 = vmatpush1.bf16.msra.mxu0 0
  %563 = vmatprep.subr.bf16.mxu0 0
  %564 = vmatpush1.bf16.msra.mxu0 0
  %565 = vmatprep.subr.bf16.mxu0 0
  %566 = vmatpush1.bf16.msra.mxu0 0
  %567 = vmatprep.subr.bf16.mxu0 0
  %568 = vmatpush1.bf16.msra.mxu0 0
  %569 = vmatprep.subr.bf16.mxu0 0
  %570 = vmatpush1.bf16.msra.mxu0 0
  %571 = vmatprep.subr.bf16.mxu0 0
  %572 = vmatpush1.bf16.msra.mxu0 0
  %573 = vmatprep.subr.bf16.mxu0 0
  %574 = vmatpush1.bf16.msra.mxu0 %v161
  %575 = vmatprep.subr.bf16.mxu0 0
  %576 = vmatpush1.bf16.msra.mxu0 %v160
  %577 = vmatprep.subr.bf16.mxu0 0
  %578 = vmatpush2.bf16.msra.mxu0 0
  %579 = vmatprep.subr.bf16.mxu0 0
  %580 = vmatpush2.bf16.msra.mxu0 0
  %581 = vmatprep.subr.bf16.mxu0 0
  %582 = vmatpush2.bf16.msra.mxu0 0
  %583 = vmatprep.subr.bf16.mxu0 0
  %584 = vmatpush2.bf16.msra.mxu0 0
  %585 = vmatprep.subr.bf16.mxu0 0
  %586 = vmatpush2.bf16.msra.mxu0 0
  %587 = vmatprep.subr.bf16.mxu0 0
  %588 = vmatpush2.bf16.msra.mxu0 0
  %589 = vmatprep.subr.bf16.mxu0 0
  %590 = vmatpush2.bf16.msra.mxu0 0
  %591 = vmatprep.subr.bf16.mxu0 0
  %592 = vmatpush2.bf16.msra.mxu0 0
  %593 = vmatprep.mubr.bf16.mxu0 0
  %594 = vmatmul.mubr.bf16.gmra.mxu0 %v559
  %v595 = vpop.f32.mrf.mxu0
  %v596 = vadd.f32 0.0, %v595
  %v597 = vpop.f32.mrf.mxu0
  %v598 = vpop.f32.mrf.mxu0
  %v599 = vpop.f32.mrf.mxu0
  %600 = vdwg.mxu0
  %v601 = vadd.f32 %v137, %v596
  %v602 = vxor.u32 %v601, 2147483648
  %v603 = vmul.f32 %v602, 1.442695
  %v604 = vpow.pop %v603
  %v605 = vadd.f32 %v604, 1.0
  %v606 = vrcp.pop %v605
  %v607 = vmul.f32 1.0, %v606
  %v608 = vadd.f32 %v596, %v221
  %610 = vrot.lane.b32.xlu0 %v608, 64
  %v611 = vpop.permute.xlu0 %610
  %v613 = vmul.f32 %v607, %v611
  %615 = vrot.lane.b32.xlu0 %v613, 64
  %v616 = vpop.permute.xlu0 %615
  %v618 = vadd.f32 %v137, %v616
  %v619 = vtanh.pop %v618
  %v620 = vsub.f32 %v553, %v619
  %622 = vrot.lane.b32.xlu0 %v620, 96
  %v623 = vpop.permute.xlu0 %622
  %v625 = vmul.f32 %v607, %v623
  %627 = vrot.lane.b32.xlu0 %v625, 32
  %v628 = vpop.permute.xlu0 %627
  %v630 = vadd.f32 %v619, %v628
  %v631 = vpack.c.bf16 %v630, %v630
  %633 = vrot.lane.b32.xlu0 %v631, 64
  %v634 = vpop.permute.xlu0 %633
  %v636 = vsel %vm164, %v634, 0
  %638 = vmatprep.subr.bf16.mxu0 0
  %639 = vmatpush1.bf16.msra.mxu0 0
  %640 = vmatprep.subr.bf16.mxu0 0
  %641 = vmatpush1.bf16.msra.mxu0 0
  %642 = vmatprep.subr.bf16.mxu0 0
  %643 = vmatpush1.bf16.msra.mxu0 0
  %644 = vmatprep.subr.bf16.mxu0 0
  %645 = vmatpush1.bf16.msra.mxu0 0
  %646 = vmatprep.subr.bf16.mxu0 0
  %647 = vmatpush1.bf16.msra.mxu0 0
  %648 = vmatprep.subr.bf16.mxu0 0
  %649 = vmatpush1.bf16.msra.mxu0 0
  %650 = vmatprep.subr.bf16.mxu0 0
  %651 = vmatpush1.bf16.msra.mxu0 %v161
  %652 = vmatprep.subr.bf16.mxu0 0
  %653 = vmatpush1.bf16.msra.mxu0 %v160
  %654 = vmatprep.subr.bf16.mxu0 0
  %655 = vmatpush2.bf16.msra.mxu0 0
  %656 = vmatprep.subr.bf16.mxu0 0
  %657 = vmatpush2.bf16.msra.mxu0 0
  %658 = vmatprep.subr.bf16.mxu0 0
  %659 = vmatpush2.bf16.msra.mxu0 0
  %660 = vmatprep.subr.bf16.mxu0 0
  %661 = vmatpush2.bf16.msra.mxu0 0
  %662 = vmatprep.subr.bf16.mxu0 0
  %663 = vmatpush2.bf16.msra.mxu0 0
  %664 = vmatprep.subr.bf16.mxu0 0
  %665 = vmatpush2.bf16.msra.mxu0 0
  %666 = vmatprep.subr.bf16.mxu0 0
  %667 = vmatpush2.bf16.msra.mxu0 0
  %668 = vmatprep.subr.bf16.mxu0 0
  %669 = vmatpush2.bf16.msra.mxu0 0
  %670 = vmatprep.mubr.bf16.mxu0 0
  %671 = vmatmul.mubr.bf16.gmra.mxu0 %v636
  %v672 = vpop.f32.mrf.mxu0
  %v673 = vadd.f32 0.0, %v672
  %v674 = vpop.f32.mrf.mxu0
  %v675 = vpop.f32.mrf.mxu0
  %v676 = vpop.f32.mrf.mxu0
  %677 = vdwg.mxu0
  %v678 = vadd.f32 %v142, %v673
  %v679 = vxor.u32 %v678, 2147483648
  %v680 = vmul.f32 %v679, 1.442695
  %v681 = vpow.pop %v680
  %v682 = vadd.f32 %v681, 1.0
  %v683 = vrcp.pop %v682
  %v684 = vmul.f32 1.0, %v683
  %v685 = vadd.f32 %v673, %v221
  %687 = vrot.lane.b32.xlu0 %v685, 64
  %v688 = vpop.permute.xlu0 %687
  %v690 = vmul.f32 %v684, %v688
  %692 = vrot.lane.b32.xlu0 %v690, 64
  %v693 = vpop.permute.xlu0 %692
  %v695 = vadd.f32 %v142, %v693
  %v696 = vtanh.pop %v695
  %v697 = vsub.f32 %v630, %v696
  %699 = vrot.lane.b32.xlu0 %v697, 96
  %v700 = vpop.permute.xlu0 %699
  %v702 = vmul.f32 %v684, %v700
  %704 = vrot.lane.b32.xlu0 %v702, 32
  %v705 = vpop.permute.xlu0 %704
  %v707 = vadd.f32 %v696, %v705
  %v708 = vpack.c.bf16 %v707, %v707
  %710 = vrot.lane.b32.xlu0 %v708, 64
  %v711 = vpop.permute.xlu0 %710
  %v713 = vsel %vm164, %v711, 0
  %715 = vmatprep.subr.bf16.mxu0 0
  %716 = vmatpush1.bf16.msra.mxu0 0
  %717 = vmatprep.subr.bf16.mxu0 0
  %718 = vmatpush1.bf16.msra.mxu0 0
  %719 = vmatprep.subr.bf16.mxu0 0
  %720 = vmatpush1.bf16.msra.mxu0 0
  %721 = vmatprep.subr.bf16.mxu0 0
  %722 = vmatpush1.bf16.msra.mxu0 0
  %723 = vmatprep.subr.bf16.mxu0 0
  %724 = vmatpush1.bf16.msra.mxu0 0
  %725 = vmatprep.subr.bf16.mxu0 0
  %726 = vmatpush1.bf16.msra.mxu0 0
  %727 = vmatprep.subr.bf16.mxu0 0
  %728 = vmatpush1.bf16.msra.mxu0 %v161
  %729 = vmatprep.subr.bf16.mxu0 0
  %730 = vmatpush1.bf16.msra.mxu0 %v160
  %731 = vmatprep.subr.bf16.mxu0 0
  %732 = vmatpush2.bf16.msra.mxu0 0
  %733 = vmatprep.subr.bf16.mxu0 0
  %734 = vmatpush2.bf16.msra.mxu0 0
  %735 = vmatprep.subr.bf16.mxu0 0
  %736 = vmatpush2.bf16.msra.mxu0 0
  %737 = vmatprep.subr.bf16.mxu0 0
  %738 = vmatpush2.bf16.msra.mxu0 0
  %739 = vmatprep.subr.bf16.mxu0 0
  %740 = vmatpush2.bf16.msra.mxu0 0
  %741 = vmatprep.subr.bf16.mxu0 0
  %742 = vmatpush2.bf16.msra.mxu0 0
  %743 = vmatprep.subr.bf16.mxu0 0
  %744 = vmatpush2.bf16.msra.mxu0 0
  %745 = vmatprep.subr.bf16.mxu0 0
  %746 = vmatpush2.bf16.msra.mxu0 0
  %747 = vmatprep.mubr.bf16.mxu0 0
  %748 = vmatmul.mubr.bf16.gmra.mxu0 %v713
  %v749 = vpop.f32.mrf.mxu0
  %v750 = vadd.f32 0.0, %v749
  %v751 = vpop.f32.mrf.mxu0
  %v752 = vpop.f32.mrf.mxu0
  %v753 = vpop.f32.mrf.mxu0
  %754 = vdwg.mxu0
  %v755 = vadd.f32 %v145, %v750
  %v756 = vxor.u32 %v755, 2147483648
  %v757 = vmul.f32 %v756, 1.442695
  %v758 = vpow.pop %v757
  %v759 = vadd.f32 %v758, 1.0
  %v760 = vrcp.pop %v759
  %v761 = vmul.f32 1.0, %v760
  %v762 = vadd.f32 %v750, %v221
  %764 = vrot.lane.b32.xlu0 %v762, 64
  %v765 = vpop.permute.xlu0 %764
  %v767 = vmul.f32 %v761, %v765
  %769 = vrot.lane.b32.xlu0 %v767, 64
  %v770 = vpop.permute.xlu0 %769
  %v772 = vadd.f32 %v145, %v770
  %v773 = vtanh.pop %v772
  %v774 = vsub.f32 %v707, %v773
  %776 = vrot.lane.b32.xlu0 %v774, 96
  %v777 = vpop.permute.xlu0 %776
  %v779 = vmul.f32 %v761, %v777
  %781 = vrot.lane.b32.xlu0 %v779, 32
  %v782 = vpop.permute.xlu0 %781
  %v784 = vadd.f32 %v773, %v782
  %v785 = vlaneseq
  %v786 = vshrl.u32 %v785, 7
  %v787 = vsub.s32 0, %v786
  %v788 = vrot.slane %v20, %v787
  %790 = vrot.lane.b32.xlu0 %v788, 64
  %v791 = vpop.permute.xlu0 %790
  %v793 = vmul.f32 %v784, %v791
  %795 = vrot.lane.b32.xlu0 %v793, 64
  %v796 = vpop.permute.xlu0 %795
  %v798 = vsel %vm164, %v796, 0.0
  %799 = vadd.xlane.f32.xlu0 %v798
  %v800 = vpop.xlane.xlu0 %799
  %v801 = vlaneseq
  %v802 = vshrl.u32 %v801, 7
  %v803 = vsub.s32 0, %v802
  %v804 = vrot.slane %v21, %v803
  %v805 = vadd.f32 %v800, %v804
  %vm806 = vcmask 7168
  %807 = vst.msk [vmem:[%s4] sm:$0xff] %vm806, %v805
  // Predicated region
  $region18: #{tpu_custom_call.1} parent=0 // pred_check
    _
  $region19: #{tpu_custom_call.1} parent=0 // pred_check_branch
    %809 = sbr.rel (0) target = $region21
  $region20: #{tpu_custom_call.1} parent=0 // pred_region
    _
  $region21: #{tpu_custom_call.1} parent=0 // pred_fallthru
    _
  // Predicated region
  $region22: #{tpu_custom_call.1} parent=0 // pred_check
    _
  $region23: #{tpu_custom_call.1} parent=0 // pred_check_branch
    %811 = sbr.rel (0) target = $region25
  $region24: #{tpu_custom_call.1} parent=0 // pred_region
    _
  $region25: #{tpu_custom_call.1} parent=0 // pred_fallthru
    _

</llo_original>
